<compile_context>
chip_gen: v7x
topology: tpu7x:2x2x1
jax: 0.10.0
libtpu: 0.0.40
codegen_flags: <defaults>
</compile_context>

<pallas_src>
import jax
import jax.numpy as jnp
from jax.experimental import pallas as pl
from jax.experimental.pallas import tpu as pltpu


# ----------------------------------------------------------------------------
# Kernel body: straight lane-dense copy of one (TILE_R, TILE_L) tile.
# ----------------------------------------------------------------------------
def _chomp_copy_kernel(x_ref, o_ref):
    o_ref[...] = x_ref[...]


# ----------------------------------------------------------------------------
# Helpers
# ----------------------------------------------------------------------------
def _round_up(v: int, m: int) -> int:
    return ((v + m - 1) // m) * m


def _sublane_multiple(dtype) -> int:
    # 32-bit -> 8, 16-bit -> 16, 8-bit -> 32 sublane packing.
    itemsize = jnp.dtype(dtype).itemsize
    return max(8, 32 // itemsize)


def _per_tile_budget_bytes() -> int:
    """Generation-aware per-tile byte budget (double-buffered in+out fits the
    default scoped-VMEM limit on every generation: footprint <= 4 * budget)."""
    kind = ""
    try:
        kind = jax.devices()[0].device_kind.lower()
    except Exception:
        pass
    if "v5" in kind:
        # v5e: ~820 GB/s HBM, 16 MiB default scoped VMEM -> 2 MiB tiles are
        # already > 10x the per-step overhead; bigger buys nothing.
        return 2 * 1024 * 1024
    # v6e (1.4 TB/s, 32 MiB scoped default) and v7x (3.2 TB/s, 64 MiB physical):
    # 4 MiB tiles -> 16 MiB double-buffered footprint, comfortably in budget.
    return 4 * 1024 * 1024


# Below this many output bytes, skip Pallas and let XLA slice/fuse.
_SMALL_CUTOFF_BYTES = 256 * 1024


# ----------------------------------------------------------------------------
# Public wrapper
# ----------------------------------------------------------------------------
def chomp1d(x: jax.Array, chomp_size: int,
            *, max_tile_rows: int = 512, max_tile_len: int = 4096,
            force_pallas: bool = False) -> jax.Array:
    """Pallas TPU implementation of Chomp1d.forward.

    Args:
      x: array of shape (N, C, L), contiguous NCL layout.
      chomp_size: number of trailing elements to drop along the last axis (>=1).
      force_pallas: bypass the small-size XLA-slice cutoff (for testing).

    Returns:
      array of shape (N, C, L - chomp_size), same dtype as x.
    """
    n, c, l = x.shape
    assert chomp_size >= 1, "chomp_size must be >= 1"
    l_out = l - chomp_size
    assert l_out > 0, "chomp_size must be smaller than sequence length"
    assert max_tile_len % 128 == 0, "max_tile_len must be a multiple of 128"

    itemsize = jnp.dtype(x.dtype).itemsize
    rows = n * c
    out_bytes = rows * l_out * itemsize

    # ---- Fast path: tiny tensors -> plain XLA slice (fuses for free). ----
    if out_bytes < _SMALL_CUTOFF_BYTES and not force_pallas:
        return x[:, :, :l_out]

    # Free reshape for a contiguous NCL array: (N, C, L) -> (N*C, L).
    x2 = x.reshape(rows, l)

    sub = _sublane_multiple(x.dtype)
    budget = _per_tile_budget_bytes()

    # --- Length tile first (lane axis, multiple of 128), within budget. ---
    max_len_budget = max(128, ((budget // (sub * itemsize)) // 128) * 128)
    tile_l = min(max_tile_len, _round_up(l_out, 128), max_len_budget)

    # --- Row tile second (sublane axis, multiple of `sub`), within budget. ---
    rows_budget = max(sub, ((budget // (tile_l * itemsize)) // sub) * sub)
    tile_r = min(_round_up(max_tile_rows, sub), _round_up(rows, sub), rows_budget)

    # --- Megacore: keep >= 2 grid steps on a parallel axis for big inputs. ---
    if (pl.cdiv(rows, tile_r) == 1 and pl.cdiv(l_out, tile_l) == 1
            and l_out >= 256):
        tile_l = max(128, _round_up(pl.cdiv(l_out, 2), 128))

    grid = (pl.cdiv(rows, tile_r), pl.cdiv(l_out, tile_l))

    out2 = pl.pallas_call(
        _chomp_copy_kernel,
        out_shape=jax.ShapeDtypeStruct((rows, l_out), x.dtype),
        grid_spec=pltpu.PrefetchScalarGridSpec(
            num_scalar_prefetch=0,
            grid=grid,
            # Same block shape and index_map for input and output: the grid
            # only spans the kept [0, L_out) region, so the chomped tail is
            # never DMA'd except (partially) inside the single remainder tile.
            in_specs=[pl.BlockSpec((tile_r, tile_l), lambda i, j: (i, j))],
            out_specs=pl.BlockSpec((tile_r, tile_l), lambda i, j: (i, j)),
        ),
        compiler_params=pltpu.CompilerParams(
            dimension_semantics=("parallel", "parallel"),
        ),
    )(x2)

    return out2.reshape(n, c, l_out)


# ----------------------------------------------------------------------------
# Self-test
# ----------------------------------------------------------------------------
if __name__ == "__main__":
    key = jax.random.PRNGKey(0)

    # 1) Small TCN-like shape: (batch, channels, seq) -> takes the XLA-slice
    #    fast path (output way below the cutoff).
    batch, channels, seq = 2, 4, 16
    chomp_size = 3  # e.g. (kernel_size - 1) * dilation = (4 - 1) * 1
    x = jax.random.normal(key, (batch, channels, seq), dtype=jnp.float32)
    out = jax.block_until_ready(chomp1d(x, chomp_size))
    assert out.shape == (batch, channels, seq - chomp_size)
    assert out.dtype == x.dtype
    assert jnp.array_equal(out, x[:, :, :-chomp_size])

    # 2) Forced Pallas path with multi-tile length + remainder masking, where
    #    the last input block extends past the input's own L (keep this test:
    #    it exercises Pallas partial-block clamping + masked output store).
    key2 = jax.random.PRNGKey(1)
    x2 = jax.random.normal(key2, (2, 8, 300), dtype=jnp.float32)
    out2 = jax.block_until_ready(
        chomp1d(x2, 5, max_tile_len=128, force_pallas=True))
    assert jnp.array_equal(out2, x2[:, :, :-5])

    # 3) Medium shape that naturally exceeds the cutoff: exercises the
    #    generation-aware tiling and the >=2-grid-step (megacore) guarantee.
    key3 = jax.random.PRNGKey(2)
    x3 = jax.random.normal(key3, (8, 64, 1024), dtype=jnp.float32)
    out3 = jax.block_until_ready(chomp1d(x3, 7))
    assert out3.shape == (8, 64, 1017)
    assert jnp.array_equal(out3, x3[:, :, :-7])

    print("KERNEL_OK")
</pallas_src>

<mosaic_0001>
module attributes {stable_mosaic.version = 11 : i64} {
  func.func @_chomp_copy_kernel(%arg0: i32, %arg1: i32, %arg2: memref<16x128xf32, #tpu.memory_space<vmem>>, %arg3: memref<16x128xf32, #tpu.memory_space<vmem>>) attributes {dimension_semantics = [#tpu.dimension_semantics<parallel>, #tpu.dimension_semantics<parallel>], iteration_bounds = array<i64: 1, 3>, scalar_prefetch = 0 : i64, scratch_operands = 0 : i64, tpu.core_type = #tpu.core_type<tc>, window_params = [{transform_indices = @transform_0, window_bounds = array<i64: 16, 128>}, {transform_indices = @transform_1, window_bounds = array<i64: 16, 128>}]} {
    %c0 = arith.constant 0 : index
    %c0_0 = arith.constant 0 : index
    %0 = vector.load %arg2[%c0, %c0_0] : memref<16x128xf32, #tpu.memory_space<vmem>>, vector<16x128xf32>
    %c0_1 = arith.constant 0 : index
    %c0_2 = arith.constant 0 : index
    %1 = vector.load %arg3[%c0_1, %c0_2] : memref<16x128xf32, #tpu.memory_space<vmem>>, vector<16x128xf32>
    tpu.vector_store %arg3[%c0_1, %c0_2], %0 {strides = array<i32>} : memref<16x128xf32, #tpu.memory_space<vmem>>, vector<16x128xf32>,
    return
  }
  func.func @transform_0(%arg0: i32, %arg1: i32) -> (i32, i32) {
    %c0_i32 = arith.constant 0 : i32
    return %arg0, %arg1 : i32, i32
  }
  func.func @transform_1(%arg0: i32, %arg1: i32) -> (i32, i32) {
    %c0_i32 = arith.constant 0 : i32
    return %arg0, %arg1 : i32, i32
  }
}

</mosaic_0001>

<llo_original>
// kernel: tpu_custom_call.1
$region0: #{tpu_custom_call.1}
  #allocation0 [shape = 'u32[]', space=smem, size = 0x4, offset = 0x4, fixed_abs, tag = 'smem constant byte address 0x4 - core index']
  #allocation1 [shape = 'u32[144,128]{1,0:T(1,128)}', space=vmem, size = 0x12000, scoped, tag = 'internal scratch']
  %s0 = inlined_call_operand.hbm [shape: f32[16,300], index: 0, kind: input, shape index: {}]
  %s1 = inlined_call_operand.hbm [shape: f32[16,295], index: 1, kind: output, shape index: {}]
  %s2 = sld [smem:[#allocation0]]
  $region41: #{tpu_custom_call.1} parent=0
    _
  %s4 = ssub.s32 1, %s2
  %s5 = scalar_select 0, %s4, %s2
  $region1: #{tpu_custom_call.1} parent=0
    #allocation2 [shape = 'u8[16384]{0}', space=vmem, size = 0x4000, scoped, tag = 'input window, operand 0']
    #allocation3 [shape = 's32[2]{0}', space=sflag, size = 0x8, scoped, tag = 'scoped memory for tpu_custom_call.1']
    #allocation4 [shape = 's32[2]{0}', space=sflag, size = 0x8, scoped, tag = 'scoped memory for tpu_custom_call.1']
    #allocation5 [shape = 'u8[16384]{0}', space=vmem, size = 0x4000, scoped, tag = 'output window, operand 0']
    %6 = vsyncpa [#allocation3], 0
    %s7 = scalar_lea.sflag [#allocation3], 1
    %8 = vsyncpa %s7, 0
    %9 = vsyncpa [#allocation4], 0
    %s10 = scalar_lea.sflag [#allocation4], 1
    %11 = vsyncpa %s10, 0
    loop: start=0, step=1, limit=5
    $region2: #{tpu_custom_call.1} parent=1 // loop_pre_header
      _
    $region3: #{tpu_custom_call.1} parent=1 // loop_header
      %s13 = sphi 0, %s17
      %p14 = scmp.ge.s32.totalorder %s13, 5
      %s20 = sphi 0, %s32
      %s21 = sphi 0, %s28
      %s22 = sphi 0, %s20
      %s23 = sphi 0, %s21
      %s24 = sphi 0, %s22
      %s25 = sphi 0, %s23
      %s37 = sphi 0, %s39
      %s40 = sphi 0, %s37
      %s41 = sphi 0, %s40
      %s57 = sphi 0, %s41
      %s65 = sphi 0, %s67
      %s68 = sphi 0, %s65
      %s69 = sphi 0, %s68
      %s85 = sphi 0, %s69
    $region4: #{tpu_custom_call.1} parent=1 // loop_header_branch
      %16 = sbr.rel (%p14) target = $region8
    $region5: #{tpu_custom_call.1} parent=1 // loop_body
      %s18 = ssub.s32 %s13, 1
      %s19 = ssub.s32 %s13, 2
      %s26 = sadd.s32 1, %s21
      %p27 = scmp.ge.s32.totalorder %s26, 3
      %s28 = scalar_select %p27, 0, %s26
      %s29 = sadd.s32 1, %s20
      %s30 = scalar_select %p27, %s29, %s20
      %p31 = scmp.ge.s32.totalorder %s30, 1
      %s32 = scalar_select %p31, 0, %s30
      %s33 = ssub.s32 %s20, %s32
      %s34 = ssub.s32 %s21, %s28
      %s35 = sor.u32 %s33, %s34
      %p36 = scmp.eq.s32.totalorder %s35, 0
      %s38 = sadd.s32 %s37, 1
      %s39 = scalar_select %p36, %s37, %s38
      %p42 = pneg %p36
      %p43 = scmp.eq.s32.totalorder %s13, 2
      %p44 = por %p42, %p43
      %p45 = scmp.ne.s32.totalorder %s37, %s40
      %p46 = scmp.eq.s32.totalorder %s13, 0
      %p47 = por %p45, %p46
      %p48 = scmp.ne.s32.totalorder %s37, %s40
      %p49 = scmp.eq.s32.totalorder %s18, 2
      %p50 = por %p48, %p49
      %p51 = scmp.ne.s32.totalorder %s40, %s41
      %p52 = scmp.eq.s32.totalorder %s18, 0
      %p53 = por %p51, %p52
      %p54 = scmp.ne.s32.totalorder %s40, %s41
      %p55 = scmp.eq.s32.totalorder %s19, 2
      %p56 = por %p54, %p55
      %p58 = scmp.ne.s32.totalorder %s41, %s57
      %p59 = scmp.eq.s32.totalorder %s19, 0
      %p60 = por %p58, %p59
      %s61 = ssub.s32 %s20, %s32
      %s62 = ssub.s32 %s21, %s28
      %s63 = sor.u32 %s61, %s62
      %p64 = scmp.eq.s32.totalorder %s63, 0
      %s66 = sadd.s32 %s65, 1
      %s67 = scalar_select %p64, %s65, %s66
      %p70 = pneg %p64
      %p71 = scmp.eq.s32.totalorder %s13, 2
      %p72 = por %p70, %p71
      %p73 = scmp.ne.s32.totalorder %s65, %s68
      %p74 = scmp.eq.s32.totalorder %s13, 0
      %p75 = por %p73, %p74
      %p76 = scmp.ne.s32.totalorder %s65, %s68
      %p77 = scmp.eq.s32.totalorder %s18, 2
      %p78 = por %p76, %p77
      %p79 = scmp.ne.s32.totalorder %s68, %s69
      %p80 = scmp.eq.s32.totalorder %s18, 0
      %p81 = por %p79, %p80
      %p82 = scmp.ne.s32.totalorder %s68, %s69
      %p83 = scmp.eq.s32.totalorder %s19, 2
      %p84 = por %p82, %p83
      %p86 = scmp.ne.s32.totalorder %s69, %s85
      %p87 = scmp.eq.s32.totalorder %s19, 0
      %p88 = por %p86, %p87
      %p89 = scmp.le.s32.totalorder 1, %s13
      %p90 = scmp.lt.s32.totalorder %s13, 4
      %p91 = pnand %p89, %p90
      %p92 = pneg %p91
      // Predicated region
      $region9: #{tpu_custom_call.1} parent=5 // pred_check
        _
      $region10: #{tpu_custom_call.1} parent=5 // pred_check_branch
        %94 = sbr.rel (%p91) target = $region12
      $region11: #{tpu_custom_call.1} parent=5 // pred_region
        %s95 = ssub.s32 %s13, 1
      $region12: #{tpu_custom_call.1} parent=5 // pred_fallthru
        _
      %p96 = scmp.lt.s32.totalorder %s13, 3
      // Predicated region
      $region13: #{tpu_custom_call.1} parent=5 // pred_check
        %p97 = pneg %p96
      $region14: #{tpu_custom_call.1} parent=5 // pred_check_branch
        %99 = sbr.rel (%p97) target = $region16
      $region15: #{tpu_custom_call.1} parent=5 // pred_region
        // Predicated region
        $region17: #{tpu_custom_call.1} parent=15 // pred_check
          %p100 = pneg %p47
        $region18: #{tpu_custom_call.1} parent=15 // pred_check_branch
          %102 = sbr.rel (%p100) target = $region20
        $region19: #{tpu_custom_call.1} parent=15 // pred_region
          %s103 = sand.u32 %s37, 1
          %s104 = scalar_lea.sflag [#allocation3], %s103
          %s105 = sand.u32 %s37, 1
          %s106 = smul.addr %s105, 16
          %s107 = scalar_lea.vmem [#allocation2], %s106
          %s108 = smul.u32 2, %s20
          %s110 = ssub.s32 256, 256
          %111 = vsyncadd %s104, %s110
          %s112 = smul.addr %s108, 3
          %s113 = sadd.s32 %s21, %s112
          %s114 = smul.addr %s113, 128
          %s115 = scalar_lea.hbm %s0, %s114
          %s116 = sshll.u32 %s107, 4
          %s117 = int_to_ptr.vmem [resolvable:$true] %s116
          %122 = dma.hbm_to_vmem [thread:$0]  %s115, 256, %s117, %s104, 384, 128, 8
        $region20: #{tpu_custom_call.1} parent=15 // pred_fallthru
          _
      $region16: #{tpu_custom_call.1} parent=5 // pred_fallthru
        _
      %p123 = scmp.le.s32.totalorder 1, %s13
      %p124 = scmp.lt.s32.totalorder %s13, 4
      %p125 = pnand %p123, %p124
      %p126 = pneg %p125
      // Predicated region
      $region21: #{tpu_custom_call.1} parent=5 // pred_check
        _
      $region22: #{tpu_custom_call.1} parent=5 // pred_check_branch
        %128 = sbr.rel (%p125) target = $region24
      $region23: #{tpu_custom_call.1} parent=5 // pred_region
        %s129 = ssub.s32 %s13, 1
        %s130 = sand.u32 %s40, 1
        %s131 = scalar_lea.sflag [#allocation3], %s130
        %s132 = sand.u32 %s40, 1
        %s133 = smul.addr %s132, 16
        %s134 = scalar_lea.vmem [#allocation2], %s133
        // Predicated region
        $region25: #{tpu_custom_call.1} parent=23 // pred_check
          %p135 = pneg %p53
        $region26: #{tpu_custom_call.1} parent=23 // pred_check_branch
          %137 = sbr.rel (%p135) target = $region28
        $region27: #{tpu_custom_call.1} parent=23 // pred_region
          %138 = dma.done %s131, 256
        $region28: #{tpu_custom_call.1} parent=23 // pred_fallthru
          _
        %s139 = sand.u32 %s40, 1
        %s140 = scalar_lea.sflag [#allocation3], %s139
        %s141 = sand.u32 %s40, 1
        %s142 = smul.addr %s141, 16
        %s143 = scalar_lea.vmem [#allocation2], %s142
        %p144 = pneg %p53
        %p145 = pneg %p50
        %p146 = pneg %p81
        %p147 = pneg %p78
        %s148 = sand.u32 %s68, 1
        %s149 = scalar_lea.sflag [#allocation4], %s148
        %s150 = sand.u32 %s68, 1
        %s151 = smul.addr %s150, 16
        %s152 = scalar_lea.vmem [#allocation5], %s151
        %s153 = smul.u32 2, %s22
        %s154 = smul.u32 2, %s22
        %v155 = vld [vmem:[%s134] sm:$0xff]
        %v156 = vld [vmem:[%s134 + $0x8] sm:$0xff]
        %157 = vst [vmem:[%s152] sm:$0xff] %v155
        %158 = vst [vmem:[%s152 + $0x8] sm:$0xff] %v156
        %s159 = sand.u32 %s68, 1
        %s160 = scalar_lea.sflag [#allocation4], %s159
        %s161 = sand.u32 %s68, 1
        %s162 = smul.addr %s161, 16
        %s163 = scalar_lea.vmem [#allocation5], %s162
        // Predicated region
        $region29: #{tpu_custom_call.1} parent=23 // pred_check
          %p164 = pneg %p78
        $region30: #{tpu_custom_call.1} parent=23 // pred_check_branch
          %166 = sbr.rel (%p164) target = $region32
        $region31: #{tpu_custom_call.1} parent=23 // pred_region
          %s167 = smul.u32 2, %s22
          %s169 = ssub.s32 256, 256
          %170 = vsyncadd %s160, %s169
          %s171 = smul.addr %s167, 3
          %s172 = sadd.s32 %s23, %s171
          %s173 = smul.addr %s172, 128
          %s174 = scalar_lea.hbm %s1, %s173
          %s175 = sshll.u32 %s163, 4
          %s176 = int_to_ptr.vmem [resolvable:$true] %s175
          %181 = dma.vmem_to_hbm [thread:$0]  %s176, 256, %s174, %s160, 128, 384, 8
        $region32: #{tpu_custom_call.1} parent=23 // pred_fallthru
          _
      $region24: #{tpu_custom_call.1} parent=5 // pred_fallthru
        _
      %p182 = scmp.le.s32.totalorder 2, %s13
      // Predicated region
      $region33: #{tpu_custom_call.1} parent=5 // pred_check
        %p183 = pneg %p182
      $region34: #{tpu_custom_call.1} parent=5 // pred_check_branch
        %185 = sbr.rel (%p183) target = $region36
      $region35: #{tpu_custom_call.1} parent=5 // pred_region
        %s186 = ssub.s32 %s13, 2
        // Predicated region
        $region37: #{tpu_custom_call.1} parent=35 // pred_check
          %p187 = pneg %p84
        $region38: #{tpu_custom_call.1} parent=35 // pred_check_branch
          %189 = sbr.rel (%p187) target = $region40
        $region39: #{tpu_custom_call.1} parent=35 // pred_region
          %s190 = sand.u32 %s69, 1
          %s191 = scalar_lea.sflag [#allocation4], %s190
          %s192 = sand.u32 %s69, 1
          %s193 = smul.addr %s192, 16
          %s194 = scalar_lea.vmem [#allocation5], %s193
          %195 = dma.done %s191, 256
        $region40: #{tpu_custom_call.1} parent=35 // pred_fallthru
          _
      $region36: #{tpu_custom_call.1} parent=5 // pred_fallthru
        _
    $region6: #{tpu_custom_call.1} parent=1 // loop_footer
      %s17 = sadd.s32 1, %s13
    $region7: #{tpu_custom_call.1} parent=1 // loop_footer_branch
      %12 = sbr.rel target = $region3
    $region8: #{tpu_custom_call.1} parent=1 // loop_exit
      _
    %196 = vsyncpa [#allocation3], 1
    %s197 = scalar_lea.sflag [#allocation3], 1
    %198 = vsyncpa %s197, 1
    %199 = vsyncpa [#allocation4], 1
    %s200 = scalar_lea.sflag [#allocation4], 1
    %201 = vsyncpa %s200, 1

</llo_original>
